<compile_context>
chip_gen: v5e
topology: v5e:2x2
jax: 0.10.0
libtpu: 0.0.40
codegen_flags: <defaults>
</compile_context>

<pallas_src>
import functools

import jax
import jax.numpy as jnp
import numpy as np
from jax.experimental import pallas as pl
from jax.experimental.pallas import tpu as pltpu


def _router_loss_kernel(*refs, num_experts, top_k, bs_total, has_mask):
    if has_mask:
        gate_ref, mask_ref, out_ref, acc_ref = refs
    else:
        gate_ref, out_ref, acc_ref = refs

    j = pl.program_id(0)   # BS-tile index (outer axis)
    l = pl.program_id(1)   # layer index (inner axis; mask block is revisited)

    @pl.when((j == 0) & (l == 0))
    def _():
        acc_ref[...] = jnp.zeros_like(acc_ref)

    tile = gate_ref.shape[-1]
    lane = jax.lax.broadcasted_iota(jnp.int32, (1, tile), 1)
    valid = (j * tile + lane) < bs_total                       # [1, tile]

    # Sanitize out-of-bounds lanes (ragged last tile may DMA garbage / NaN).
    logits = jnp.where(valid, gate_ref[...].astype(jnp.float32), 0.0)  # [E,tile]

    if has_mask:
        tokmask = jnp.where(valid, mask_ref[...].astype(jnp.float32), 0.0)
    else:
        tokmask = valid.astype(jnp.float32)                    # [1, tile]

    # Softmax over experts (sublane axis); the token mask is folded into the
    # [1,tile] scale so only one [E,tile] multiply remains.
    m = jnp.max(logits, axis=0, keepdims=True)                 # [1, tile]
    e = jnp.exp(logits - m)                                    # [E, tile]
    scale = tokmask * pl.reciprocal(jnp.sum(e, axis=0, keepdims=True),
                                    approx=True)               # [1, tile]
    masked_routing = e * scale                                 # [E, tile]

    # Top-k on raw logits (softmax is monotonic -> identical selection).
    # Iterative argmax with first-index tie break (matches torch.topk /
    # lax.top_k); the softmax max is reused as iteration-0's running max.
    expert_iota = jax.lax.broadcasted_iota(jnp.int32, logits.shape, 0)
    remaining = logits
    cur_max = m
    expert_counts = jnp.zeros_like(logits)
    for kk in range(top_k):
        is_max = remaining == cur_max
        first = jnp.min(jnp.where(is_max, expert_iota, num_experts),
                        axis=0, keepdims=True)                 # [1, tile]
        sel = expert_iota == first                             # [E, tile] bool
        expert_counts = expert_counts + jnp.where(sel, tokmask, 0.0)
        if kk + 1 < top_k:                                     # skip dead work
            remaining = jnp.where(sel, -jnp.inf, remaining)
            cur_max = jnp.max(remaining, axis=0, keepdims=True)

    # One cross-lane reduce per tile, accumulated into a single-vreg scratch:
    # lane 0: sum(mask*softmax), lane 1: sum(mask*onehot), lane 2: sum(mask).
    r_part = jnp.sum(masked_routing, axis=-1, keepdims=True)   # [E, 1]
    c_part = jnp.sum(expert_counts, axis=-1, keepdims=True)    # [E, 1]
    m_part = jnp.sum(tokmask, axis=-1, keepdims=True)          # [1, 1]
    out_lane = jax.lax.broadcasted_iota(jnp.int32, (num_experts, 128), 1)
    acc_ref[...] += (jnp.where(out_lane == 0, r_part, 0.0)
                     + jnp.where(out_lane == 1, c_part, 0.0)
                     + jnp.where(out_lane == 2, m_part, 0.0))

    @pl.when((j == pl.num_programs(0) - 1) & (l == pl.num_programs(1) - 1))
    def _():
        out_ref[...] = acc_ref[...].astype(out_ref.dtype)


def _round_up(x, m):
    return ((x + m - 1) // m) * m


def mola_router_loss(gate_logits, attention_mask, *, num_experts, top_k,
                     aux_loss_coef, tile_tokens=32768):
    """Pallas implementation of MolaRouterLoss.forward.

    gate_logits: [T, num_experts], T = num_layers * batch * seq (any float dtype)
    attention_mask: [batch, seq] (0/1) or None
    """
    T, E = gate_logits.shape
    assert E == num_experts

    if attention_mask is not None:
        B, S = attention_mask.shape
        BS = B * S
        L = T // BS
        assert L * BS == T, "gate_logits rows must be num_layers * batch * seq"
        # [T,E] -> [L,BS,E] (free reshape) -> [L,E,BS]: a single relayout pass;
        # a producer emitting expert-major logits would skip it entirely.
        gate3 = jnp.transpose(gate_logits.reshape(L, BS, E), (0, 2, 1))
        # The per-layer mask stays [1, B*S] (bf16); it is NOT tiled to length T.
        mask2d = attention_mask.reshape(1, BS).astype(jnp.bfloat16)
        has_mask = True
    else:
        BS, L = T, 1
        gate3 = jnp.transpose(gate_logits)[None]               # [1, E, T]
        mask2d = None
        has_mask = False

    # Token tile: big (amortize grid-step overhead), multiple of 128 lanes,
    # capped by a per-generation VMEM budget. The accumulator is a single vreg
    # now, so only the double-buffered gate/mask blocks count against it.
    itemsize = jnp.dtype(gate3.dtype).itemsize
    bytes_per_token = 2 * E * itemsize + (2 * 2 if has_mask else 0)
    try:
        phys_vmem = int(pltpu.get_tpu_info().vmem_capacity_bytes)
    except Exception:
        phys_vmem = 64 * 1024 * 1024                           # conservative (v7x)
    vmem_budget = min(max(phys_vmem // 3, 16 << 20), 48 << 20)
    vmem_limit = int(min(max(2 * vmem_budget, 32 << 20), phys_vmem * 3 // 4))
    max_tile = max(128, (vmem_budget // bytes_per_token) // 128 * 128)

    if BS <= 128:
        tile = BS                                              # full-dim block
    else:
        tile = min(_round_up(tile_tokens, 128), max_tile, _round_up(BS, 128))
    nj = -(-BS // tile)                                        # ragged last tile ok

    kernel = functools.partial(_router_loss_kernel, num_experts=E, top_k=top_k,
                               bs_total=BS, has_mask=has_mask)

    in_specs = [pl.BlockSpec((None, E, tile), lambda j, l: (l, 0, j))]
    operands = [gate3]
    if has_mask:
        in_specs.append(pl.BlockSpec((1, tile), lambda j, l: (0, j)))
        operands.append(mask2d)

    out = pl.pallas_call(
        kernel,
        out_shape=jax.ShapeDtypeStruct((E, 128), jnp.float32),
        grid_spec=pltpu.PrefetchScalarGridSpec(
            num_scalar_prefetch=0,
            grid=(nj, L),            # layer axis innermost: the [1,tile] mask
            in_specs=in_specs,       # block index stays fixed for L steps.
            out_specs=pl.BlockSpec((E, 128), lambda j, l: (0, 0)),
            scratch_shapes=[pltpu.VMEM((E, 128), jnp.float32)],
        ),
        compiler_params=pltpu.CompilerParams(
            dimension_semantics=("arbitrary", "arbitrary"),
            vmem_limit_bytes=vmem_limit),
    )(*operands)

    router_sum = out[:, 0]           # sum_t mask * softmax   per expert
    expert_sum = out[:, 1]           # sum_t mask * onehot(k) per expert
    mask_sum = out[0, 2]             # sum_t mask (over all layers)
    loss = jnp.sum(router_sum * expert_sum) / (mask_sum * mask_sum)
    return (aux_loss_coef * num_experts * loss).astype(jnp.float32)


def _reference_loss(gate_logits, attention_mask, num_experts, top_k, coef):
    rw = jax.nn.softmax(gate_logits.astype(jnp.float32), axis=-1)
    _, sel = jax.lax.top_k(rw, top_k)
    em = jax.nn.one_hot(sel, num_experts, dtype=jnp.float32)   # [T, K, E]
    if attention_mask is None:
        tpe = em.mean(axis=0)
        rpe = rw.mean(axis=0)
    else:
        B, S = attention_mask.shape
        L = rw.shape[0] // (B * S)
        eam = jnp.broadcast_to(
            attention_mask[None, :, :, None, None].astype(jnp.float32),
            (L, B, S, top_k, num_experts)).reshape(-1, top_k, num_experts)
        tpe = (em * eam).sum(0) / eam.sum(0)
        ram = jnp.broadcast_to(
            attention_mask[None, :, :, None].astype(jnp.float32),
            (L, B, S, num_experts)).reshape(-1, num_experts)
        rpe = (rw * ram).sum(0) / ram.sum(0)
    return coef * jnp.sum(tpe * rpe[None, :]) * num_experts


if __name__ == "__main__":
    # MolaConfig-like hyperparameters
    num_experts = 8
    top_k = 2
    aux_loss_coef = 0.01

    key = jax.random.PRNGKey(0)
    kg, km = jax.random.split(key)

    def run_case(L, B, S, dtype=jnp.float32, use_mask=True, rtol=2e-3):
        T = L * B * S
        g = jax.random.normal(kg, (T, num_experts), dtype=jnp.float32).astype(dtype)
        am = (jax.random.bernoulli(km, 0.8, (B, S)).astype(jnp.int32)
              if use_mask else None)
        got = jax.block_until_ready(
            mola_router_loss(g, am, num_experts=num_experts, top_k=top_k,
                             aux_loss_coef=aux_loss_coef))
        want = _reference_loss(g, am, num_experts, top_k, aux_loss_coef)
        np.testing.assert_allclose(np.asarray(got), np.asarray(want),
                                   rtol=rtol, atol=1e-7)

    # lane-aligned fast path (B*S multiple of 128)
    run_case(L=2, B=2, S=128)
    # ragged last lane-tile (B*S not a multiple of 128) -> in-kernel OOB masking
    run_case(L=2, B=2, S=72)
    # tiny shapes (B*S < 128) -> full-dim block
    run_case(L=2, B=2, S=8)
    # attention_mask=None path
    run_case(L=2, B=2, S=128, use_mask=False)
    # bf16 logits pass straight through (cast happens in-kernel)
    run_case(L=2, B=2, S=128, dtype=jnp.bfloat16, rtol=5e-3)

    print("KERNEL_OK")
</pallas_src>

<mosaic_0001>
module attributes {stable_mosaic.version = 11 : i64} {
  func.func @_router_loss_kernel(%arg0: i32, %arg1: i32, %arg2: memref<1x8x256xf32, #tpu.memory_space<vmem>>, %arg3: memref<1x256xbf16, #tpu.memory_space<vmem>>, %arg4: memref<8x128xf32, #tpu.memory_space<vmem>>, %arg5: memref<8x128xf32, #tpu.memory_space<vmem>>) attributes {dimension_semantics = [#tpu.dimension_semantics<arbitrary>, #tpu.dimension_semantics<arbitrary>], iteration_bounds = array<i64: 1, 2>, scalar_prefetch = 0 : i64, scratch_operands = 1 : i64, tpu.core_type = #tpu.core_type<tc>, window_params = [{transform_indices = @transform_0, window_bounds = array<i64: 1, 8, 256>}, {transform_indices = @transform_1, window_bounds = array<i64: 1, 256>}, {pipeline_mode = #tpu.pipeline_mode<synchronous>, transform_indices = @transform_2, window_bounds = array<i64: 8, 128>}]} {
    %c0_i32 = arith.constant 0 : i32
    %0 = arith.cmpi eq, %arg0, %c0_i32 : i32
    %c0_i32_0 = arith.constant 0 : i32
    %1 = arith.cmpi eq, %arg1, %c0_i32_0 : i32
    %2 = arith.andi %0, %1 : i1
    %3 = arith.extui %2 : i1 to i32
    %c0_i32_1 = arith.constant 0 : i32
    %4 = arith.cmpi ne, %3, %c0_i32_1 : i32
    scf.if %4 {
      %cst_32 = arith.constant 0.000000e+00 : f32
      %99 = vector.broadcast %cst_32 : f32 to vector<8x128xf32>
      %c0_33 = arith.constant 0 : index
      %c0_34 = arith.constant 0 : index
      %100 = vector.load %arg5[%c0_33, %c0_34] : memref<8x128xf32, #tpu.memory_space<vmem>>, vector<8x128xf32>
      tpu.vector_store %arg5[%c0_33, %c0_34], %99 {strides = array<i32>} : memref<8x128xf32, #tpu.memory_space<vmem>>, vector<8x128xf32>,
    } else {
    }
    %5 = tpu.iota {dimensions = array<i32: 1>} : vector<1x256xi32>
    %c256_i32 = arith.constant 256 : i32
    %6 = arith.muli %arg0, %c256_i32 : i32
    %7 = vector.broadcast %6 : i32 to vector<1x256xi32>
    %8 = arith.addi %7, %5 : vector<1x256xi32>
    %c256_i32_2 = arith.constant 256 : i32
    %9 = vector.broadcast %c256_i32_2 : i32 to vector<1x256xi32>
    %10 = arith.cmpi slt, %8, %9 : vector<1x256xi32>
    %c0 = arith.constant 0 : index
    %c0_3 = arith.constant 0 : index
    %c0_4 = arith.constant 0 : index
    %11 = vector.load %arg2[%c0, %c0_3, %c0_4] : memref<1x8x256xf32, #tpu.memory_space<vmem>>, vector<1x8x256xf32>
    %12 = vector.shape_cast %11 : vector<1x8x256xf32> to vector<8x256xf32>
    %cst = arith.constant 0.000000e+00 : f32
    %13 = vector.shape_cast %10 : vector<1x256xi1> to vector<1x256xi1>
    %14 = vector.broadcast %13 : vector<1x256xi1> to vector<8x256xi1>
    %15 = vector.broadcast %cst : f32 to vector<8x256xf32>
    %16 = arith.select %14, %12, %15 : vector<8x256xi1>, vector<8x256xf32>
    %c0_5 = arith.constant 0 : index
    %c0_6 = arith.constant 0 : index
    %17 = vector.load %arg3[%c0_5, %c0_6] : memref<1x256xbf16, #tpu.memory_space<vmem>>, vector<1x256xbf16>
    %18 = arith.extf %17 : vector<1x256xbf16> to vector<1x256xf32>
    %cst_7 = arith.constant 0.000000e+00 : f32
    %19 = vector.broadcast %cst_7 : f32 to vector<1x256xf32>
    %20 = arith.select %10, %18, %19 : vector<1x256xi1>, vector<1x256xf32>
    %cst_8 = arith.constant dense<0xFF800000> : vector<256xf32>
    %21 = vector.multi_reduction <maximumf>, %16, %cst_8 [0] : vector<8x256xf32> to vector<256xf32>
    %22 = vector.shape_cast %21 : vector<256xf32> to vector<1x256xf32>
    %23 = vector.broadcast %22 : vector<1x256xf32> to vector<8x256xf32>
    %24 = arith.subf %16, %23 : vector<8x256xf32>
    %25 = math.exp %24 : vector<8x256xf32>
    %cst_9 = arith.constant dense<0.000000e+00> : vector<256xf32>
    %26 = vector.multi_reduction <add>, %25, %cst_9 [0] : vector<8x256xf32> to vector<256xf32>
    %27 = vector.shape_cast %26 : vector<256xf32> to vector<1x256xf32>
    %28 = tpu.reciprocal %27 {approx = true} : vector<1x256xf32> -> vector<1x256xf32>
    %29 = arith.mulf %20, %28 : vector<1x256xf32>
    %30 = vector.broadcast %29 : vector<1x256xf32> to vector<8x256xf32>
    %31 = arith.mulf %25, %30 : vector<8x256xf32>
    %32 = tpu.iota {dimensions = array<i32: 0>} : vector<8x256xi32>
    %cst_10 = arith.constant 0.000000e+00 : f32
    %33 = vector.broadcast %cst_10 : f32 to vector<8x256xf32>
    %34 = vector.broadcast %22 : vector<1x256xf32> to vector<8x256xf32>
    %35 = arith.cmpf oeq, %16, %34 : vector<8x256xf32>
    %c8_i32 = arith.constant 8 : i32
    %36 = vector.broadcast %c8_i32 : i32 to vector<8x256xi32>
    %37 = arith.select %35, %32, %36 : vector<8x256xi1>, vector<8x256xi32>
    %cst_11 = arith.constant dense<2147483647> : vector<256xi32>
    %38 = vector.multi_reduction <minsi>, %37, %cst_11 [0] : vector<8x256xi32> to vector<256xi32>
    %39 = vector.shape_cast %38 : vector<256xi32> to vector<1x256xi32>
    %40 = vector.broadcast %39 : vector<1x256xi32> to vector<8x256xi32>
    %41 = arith.cmpi eq, %32, %40 : vector<8x256xi32>
    %cst_12 = arith.constant 0.000000e+00 : f32
    %42 = vector.shape_cast %20 : vector<1x256xf32> to vector<1x256xf32>
    %43 = vector.broadcast %42 : vector<1x256xf32> to vector<8x256xf32>
    %44 = vector.broadcast %cst_12 : f32 to vector<8x256xf32>
    %45 = arith.select %41, %43, %44 : vector<8x256xi1>, vector<8x256xf32>
    %46 = arith.addf %33, %45 : vector<8x256xf32>
    %cst_13 = arith.constant 0xFF800000 : f32
    %47 = vector.broadcast %cst_13 : f32 to vector<8x256xf32>
    %48 = arith.select %41, %47, %16 : vector<8x256xi1>, vector<8x256xf32>
    %cst_14 = arith.constant dense<0xFF800000> : vector<256xf32>
    %49 = vector.multi_reduction <maximumf>, %48, %cst_14 [0] : vector<8x256xf32> to vector<256xf32>
    %50 = vector.shape_cast %49 : vector<256xf32> to vector<1x256xf32>
    %51 = vector.broadcast %50 : vector<1x256xf32> to vector<8x256xf32>
    %52 = arith.cmpf oeq, %48, %51 : vector<8x256xf32>
    %c8_i32_15 = arith.constant 8 : i32
    %53 = vector.broadcast %c8_i32_15 : i32 to vector<8x256xi32>
    %54 = arith.select %52, %32, %53 : vector<8x256xi1>, vector<8x256xi32>
    %cst_16 = arith.constant dense<2147483647> : vector<256xi32>
    %55 = vector.multi_reduction <minsi>, %54, %cst_16 [0] : vector<8x256xi32> to vector<256xi32>
    %56 = vector.shape_cast %55 : vector<256xi32> to vector<1x256xi32>
    %57 = vector.broadcast %56 : vector<1x256xi32> to vector<8x256xi32>
    %58 = arith.cmpi eq, %32, %57 : vector<8x256xi32>
    %cst_17 = arith.constant 0.000000e+00 : f32
    %59 = vector.shape_cast %20 : vector<1x256xf32> to vector<1x256xf32>
    %60 = vector.broadcast %59 : vector<1x256xf32> to vector<8x256xf32>
    %61 = vector.broadcast %cst_17 : f32 to vector<8x256xf32>
    %62 = arith.select %58, %60, %61 : vector<8x256xi1>, vector<8x256xf32>
    %63 = arith.addf %46, %62 : vector<8x256xf32>
    %cst_18 = arith.constant dense<0.000000e+00> : vector<8xf32>
    %64 = vector.multi_reduction <add>, %31, %cst_18 [1] : vector<8x256xf32> to vector<8xf32>
    %65 = vector.shape_cast %64 : vector<8xf32> to vector<8x1xf32>
    %cst_19 = arith.constant dense<0.000000e+00> : vector<8xf32>
    %66 = vector.multi_reduction <add>, %63, %cst_19 [1] : vector<8x256xf32> to vector<8xf32>
    %67 = vector.shape_cast %66 : vector<8xf32> to vector<8x1xf32>
    %cst_20 = arith.constant dense<0.000000e+00> : vector<1xf32>
    %68 = vector.multi_reduction <add>, %20, %cst_20 [1] : vector<1x256xf32> to vector<1xf32>
    %69 = vector.shape_cast %68 : vector<1xf32> to vector<1x1xf32>
    %70 = tpu.iota {dimensions = array<i32: 1>} : vector<8x128xi32>
    %c0_21 = arith.constant 0 : index
    %c0_22 = arith.constant 0 : index
    %71 = vector.load %arg5[%c0_21, %c0_22] : memref<8x128xf32, #tpu.memory_space<vmem>>, vector<8x128xf32>
    %c0_i32_23 = arith.constant 0 : i32
    %72 = vector.broadcast %c0_i32_23 : i32 to vector<8x128xi32>
    %73 = arith.cmpi eq, %70, %72 : vector<8x128xi32>
    %cst_24 = arith.constant 0.000000e+00 : f32
    %74 = vector.shape_cast %65 : vector<8x1xf32> to vector<8x1xf32>
    %75 = vector.broadcast %74 : vector<8x1xf32> to vector<8x128xf32>
    %76 = vector.broadcast %cst_24 : f32 to vector<8x128xf32>
    %77 = arith.select %73, %75, %76 : vector<8x128xi1>, vector<8x128xf32>
    %c1_i32 = arith.constant 1 : i32
    %78 = vector.broadcast %c1_i32 : i32 to vector<8x128xi32>
    %79 = arith.cmpi eq, %70, %78 : vector<8x128xi32>
    %cst_25 = arith.constant 0.000000e+00 : f32
    %80 = vector.shape_cast %67 : vector<8x1xf32> to vector<8x1xf32>
    %81 = vector.broadcast %80 : vector<8x1xf32> to vector<8x128xf32>
    %82 = vector.broadcast %cst_25 : f32 to vector<8x128xf32>
    %83 = arith.select %79, %81, %82 : vector<8x128xi1>, vector<8x128xf32>
    %84 = arith.addf %77, %83 : vector<8x128xf32>
    %c2_i32 = arith.constant 2 : i32
    %85 = vector.broadcast %c2_i32 : i32 to vector<8x128xi32>
    %86 = arith.cmpi eq, %70, %85 : vector<8x128xi32>
    %cst_26 = arith.constant 0.000000e+00 : f32
    %87 = vector.shape_cast %69 : vector<1x1xf32> to vector<1x1xf32>
    %88 = vector.broadcast %87 : vector<1x1xf32> to vector<8x128xf32>
    %89 = vector.broadcast %cst_26 : f32 to vector<8x128xf32>
    %90 = arith.select %86, %88, %89 : vector<8x128xi1>, vector<8x128xf32>
    %91 = arith.addf %84, %90 : vector<8x128xf32>
    %92 = arith.addf %71, %91 : vector<8x128xf32>
    %c0_27 = arith.constant 0 : index
    %c0_28 = arith.constant 0 : index
    %93 = vector.load %arg5[%c0_27, %c0_28] : memref<8x128xf32, #tpu.memory_space<vmem>>, vector<8x128xf32>
    tpu.vector_store %arg5[%c0_27, %c0_28], %92 {strides = array<i32>} : memref<8x128xf32, #tpu.memory_space<vmem>>, vector<8x128xf32>,
    %c0_i32_29 = arith.constant 0 : i32
    %94 = arith.cmpi eq, %arg0, %c0_i32_29 : i32
    %c1_i32_30 = arith.constant 1 : i32
    %95 = arith.cmpi eq, %arg1, %c1_i32_30 : i32
    %96 = arith.andi %94, %95 : i1
    %97 = arith.extui %96 : i1 to i32
    %c0_i32_31 = arith.constant 0 : i32
    %98 = arith.cmpi ne, %97, %c0_i32_31 : i32
    scf.if %98 {
      %c0_32 = arith.constant 0 : index
      %c0_33 = arith.constant 0 : index
      %99 = vector.load %arg5[%c0_32, %c0_33] : memref<8x128xf32, #tpu.memory_space<vmem>>, vector<8x128xf32>
      %c0_34 = arith.constant 0 : index
      %c0_35 = arith.constant 0 : index
      %100 = vector.load %arg4[%c0_34, %c0_35] : memref<8x128xf32, #tpu.memory_space<vmem>>, vector<8x128xf32>
      tpu.vector_store %arg4[%c0_34, %c0_35], %99 {strides = array<i32>} : memref<8x128xf32, #tpu.memory_space<vmem>>, vector<8x128xf32>,
    } else {
    }
    return
  }
  func.func @transform_0(%arg0: i32, %arg1: i32) -> (i32, i32, i32) {
    %c0_i32 = arith.constant 0 : i32
    %c0_i32_0 = arith.constant 0 : i32
    return %arg1, %c0_i32, %arg0 : i32, i32, i32
  }
  func.func @transform_1(%arg0: i32, %arg1: i32) -> (i32, i32) {
    %c0_i32 = arith.constant 0 : i32
    %c0_i32_0 = arith.constant 0 : i32
    return %c0_i32, %arg0 : i32, i32
  }
  func.func @transform_2(%arg0: i32, %arg1: i32) -> (i32, i32) {
    %c0_i32 = arith.constant 0 : i32
    %c0_i32_0 = arith.constant 0 : i32
    %c0_i32_1 = arith.constant 0 : i32
    return %c0_i32, %c0_i32_0 : i32, i32
  }
}

</mosaic_0001>

<llo_original>
// kernel: tpu_custom_call.1
$region0: #{tpu_custom_call.1}
  #allocation0 [shape = 'u32[]', space=smem, size = 0x4, offset = 0x4, fixed_abs, tag = 'smem constant byte address 0x4 - core index']
  #allocation1 [shape = 'u32[72,128]{1,0:T(1,128)}', space=vmem, size = 0x9000, scoped, tag = 'internal scratch']
  #allocation2 [shape = 'f32[8,128]{1,0:T(8,128)}', space=vmem, size = 0x1000, scoped, tag = 'scratch operand']
  %s0 = inlined_call_operand.hbm [shape: f32[2,8,256], index: 0, kind: input, shape index: {}]
  %s1 = inlined_call_operand.hbm [shape: bf16[1,256], index: 1, kind: input, shape index: {}]
  %s2 = inlined_call_operand.hbm [shape: f32[8,128], index: 2, kind: output, shape index: {}]
  %s3 = sld [smem:[#allocation0]]
  $region57: #{tpu_custom_call.1} parent=0
    _
  %s5 = ssub.s32 1, %s3
  %s6 = scalar_select 0, %s5, %s3
  $region1: #{tpu_custom_call.1} parent=0
    #allocation3 [shape = 'u8[16384]{0}', space=vmem, size = 0x4000, scoped, tag = 'input window, operand 0']
    #allocation4 [shape = 's32[2]{0}', space=sflag, size = 0x8, scoped, tag = 'scoped memory for tpu_custom_call.1']
    #allocation5 [shape = 's32[2]{0}', space=sflag, size = 0x8, scoped, tag = 'scoped memory for tpu_custom_call.1']
    #allocation6 [shape = 'u8[1024]{0}', space=vmem, size = 0x400, scoped, tag = 'input window, operand 1, single buffered']
    #allocation7 [shape = 's32[1]{0}', space=sflag, size = 0x4, scoped, tag = 'scoped memory for tpu_custom_call.1']
    #allocation8 [shape = 'u8[4096]{0}', space=vmem, size = 0x1000, scoped, tag = 'output window, operand 0, single buffered']
    %7 = vsyncpa [#allocation4], 0
    %s8 = scalar_lea.sflag [#allocation4], 1
    %9 = vsyncpa %s8, 0
    %10 = vsyncpa [#allocation7], 0
    %11 = vsyncpa [#allocation5], 0
    loop: start=0, step=1, limit=4
    $region2: #{tpu_custom_call.1} parent=1 // loop_pre_header
      _
    $region3: #{tpu_custom_call.1} parent=1 // loop_header
      %s13 = sphi 0, %s17
      %p14 = scmp.ge.s32.totalorder %s13, 4
      %s20 = sphi 0, %s32
      %s21 = sphi 0, %s28
      %s22 = sphi 0, %s20
      %s23 = sphi 0, %s21
      %s24 = sphi 0, %s22
      %s25 = sphi 0, %s23
      %s37 = sphi 0, %s39
      %s40 = sphi 0, %s37
      %s41 = sphi 0, %s40
      %s57 = sphi 0, %s41
      %s63 = sphi 0, %s65
      %s66 = sphi 0, %s63
      %s67 = sphi 0, %s66
      %s83 = sphi 0, %s67
      %s87 = sphi 0, %s87
      %s89 = sphi 0, %s87
      %s90 = sphi 0, %s89
      %s104 = sphi 0, %s90
    $region4: #{tpu_custom_call.1} parent=1 // loop_header_branch
      %16 = sbr.rel (%p14) target = $region8
    $region5: #{tpu_custom_call.1} parent=1 // loop_body
      %s18 = ssub.s32 %s13, 1
      %s19 = ssub.s32 %s13, 2
      %s26 = sadd.s32 1, %s21
      %p27 = scmp.ge.s32.totalorder %s26, 2
      %s28 = scalar_select %p27, 0, %s26
      %s29 = sadd.s32 1, %s20
      %s30 = scalar_select %p27, %s29, %s20
      %p31 = scmp.ge.s32.totalorder %s30, 1
      %s32 = scalar_select %p31, 0, %s30
      %s33 = ssub.s32 %s21, %s28
      %s34 = ssub.s32 %s20, %s32
      %s35 = sor.u32 %s33, %s34
      %p36 = scmp.eq.s32.totalorder %s35, 0
      %s38 = sadd.s32 %s37, 1
      %s39 = scalar_select %p36, %s37, %s38
      %p42 = pneg %p36
      %p43 = scmp.eq.s32.totalorder %s13, 1
      %p44 = por %p42, %p43
      %p45 = scmp.ne.s32.totalorder %s37, %s40
      %p46 = scmp.eq.s32.totalorder %s13, 0
      %p47 = por %p45, %p46
      %p48 = scmp.ne.s32.totalorder %s37, %s40
      %p49 = scmp.eq.s32.totalorder %s18, 1
      %p50 = por %p48, %p49
      %p51 = scmp.ne.s32.totalorder %s40, %s41
      %p52 = scmp.eq.s32.totalorder %s18, 0
      %p53 = por %p51, %p52
      %p54 = scmp.ne.s32.totalorder %s40, %s41
      %p55 = scmp.eq.s32.totalorder %s19, 1
      %p56 = por %p54, %p55
      %p58 = scmp.ne.s32.totalorder %s41, %s57
      %p59 = scmp.eq.s32.totalorder %s19, 0
      %p60 = por %p58, %p59
      %s61 = ssub.s32 %s20, %s32
      %p62 = scmp.eq.s32.totalorder %s61, 0
      %s64 = sadd.s32 %s63, 1
      %s65 = scalar_select %p62, %s63, %s64
      %p68 = pneg %p62
      %p69 = scmp.eq.s32.totalorder %s13, 1
      %p70 = por %p68, %p69
      %p71 = scmp.ne.s32.totalorder %s63, %s66
      %p72 = scmp.eq.s32.totalorder %s13, 0
      %p73 = por %p71, %p72
      %p74 = scmp.ne.s32.totalorder %s63, %s66
      %p75 = scmp.eq.s32.totalorder %s18, 1
      %p76 = por %p74, %p75
      %p77 = scmp.ne.s32.totalorder %s66, %s67
      %p78 = scmp.eq.s32.totalorder %s18, 0
      %p79 = por %p77, %p78
      %p80 = scmp.ne.s32.totalorder %s66, %s67
      %p81 = scmp.eq.s32.totalorder %s19, 1
      %p82 = por %p80, %p81
      %p84 = scmp.ne.s32.totalorder %s67, %s83
      %p85 = scmp.eq.s32.totalorder %s19, 0
      %p86 = por %p84, %p85
      %s88 = sadd.s32 %s87, 1
      %p91 = scmp.eq.s32.totalorder %s13, 1
      %p92 = scmp.ne.s32.totalorder %s87, %s89
      %p93 = scmp.eq.s32.totalorder %s13, 0
      %p94 = por %p92, %p93
      %p95 = scmp.ne.s32.totalorder %s87, %s89
      %p96 = scmp.eq.s32.totalorder %s18, 1
      %p97 = por %p95, %p96
      %p98 = scmp.ne.s32.totalorder %s89, %s90
      %p99 = scmp.eq.s32.totalorder %s18, 0
      %p100 = por %p98, %p99
      %p101 = scmp.ne.s32.totalorder %s89, %s90
      %p102 = scmp.eq.s32.totalorder %s19, 1
      %p103 = por %p101, %p102
      %p105 = scmp.ne.s32.totalorder %s90, %s104
      %p106 = scmp.eq.s32.totalorder %s19, 0
      %p107 = por %p105, %p106
      %p108 = scmp.le.s32.totalorder 1, %s13
      %p109 = scmp.lt.s32.totalorder %s13, 3
      %p110 = pnand %p108, %p109
      %p111 = pneg %p110
      // Predicated region
      $region9: #{tpu_custom_call.1} parent=5 // pred_check
        _
      $region10: #{tpu_custom_call.1} parent=5 // pred_check_branch
        %113 = sbr.rel (%p110) target = $region12
      $region11: #{tpu_custom_call.1} parent=5 // pred_region
        %s114 = ssub.s32 %s13, 1
        // Predicated region
        $region13: #{tpu_custom_call.1} parent=11 // pred_check
          %p115 = pneg %p79
        $region14: #{tpu_custom_call.1} parent=11 // pred_check_branch
          %117 = sbr.rel (%p115) target = $region16
        $region15: #{tpu_custom_call.1} parent=11 // pred_region
          %s118 = smul.u32 2, %s22
          %120 = vsyncadd [#allocation7], 0
          %s121 = scalar_lea.hbm %s1, %s118
          %s123 = sshll.u32 %s121, 4
          %s124 = int_to_ptr.hbm [resolvable:$true] %s123
          %s125 = sshll.u32 [#allocation6], 4
          %s126 = int_to_ptr.vmem [resolvable:$true] %s125
          %128 = dma.hbm_to_vmem [thread:$0]  %s124, 32, %s126, [#allocation7]
        $region16: #{tpu_custom_call.1} parent=11 // pred_fallthru
          _
      $region12: #{tpu_custom_call.1} parent=5 // pred_fallthru
        _
      %p129 = scmp.lt.s32.totalorder %s13, 2
      // Predicated region
      $region17: #{tpu_custom_call.1} parent=5 // pred_check
        %p130 = pneg %p129
      $region18: #{tpu_custom_call.1} parent=5 // pred_check_branch
        %132 = sbr.rel (%p130) target = $region20
      $region19: #{tpu_custom_call.1} parent=5 // pred_region
        // Predicated region
        $region21: #{tpu_custom_call.1} parent=19 // pred_check
          %p133 = pneg %p47
        $region22: #{tpu_custom_call.1} parent=19 // pred_check_branch
          %135 = sbr.rel (%p133) target = $region24
        $region23: #{tpu_custom_call.1} parent=19 // pred_region
          %s136 = sand.u32 %s37, 1
          %s137 = scalar_lea.sflag [#allocation4], %s136
          %s138 = sand.u32 %s37, 1
          %s139 = smul.addr %s138, 16
          %s140 = scalar_lea.vmem [#allocation3], %s139
          %s141 = smul.u32 2, %s20
          %143 = vsyncadd %s137, 0
          %s144 = smul.addr %s21, 2
          %s145 = sadd.s32 %s141, %s144
          %s146 = smul.addr %s145, 8
          %s147 = scalar_lea.hbm %s0, %s146
          %s149 = sshll.u32 %s147, 4
          %s150 = int_to_ptr.hbm [resolvable:$true] %s149
          %s151 = sshll.u32 %s140, 4
          %s152 = int_to_ptr.vmem [resolvable:$true] %s151
          %154 = dma.hbm_to_vmem [thread:$0]  %s150, 256, %s152, %s137
        $region24: #{tpu_custom_call.1} parent=19 // pred_fallthru
          _
      $region20: #{tpu_custom_call.1} parent=5 // pred_fallthru
        _
      %p155 = scmp.le.s32.totalorder 1, %s13
      %p156 = scmp.lt.s32.totalorder %s13, 3
      %p157 = pnand %p155, %p156
      %p158 = pneg %p157
      // Predicated region
      $region25: #{tpu_custom_call.1} parent=5 // pred_check
        _
      $region26: #{tpu_custom_call.1} parent=5 // pred_check_branch
        %160 = sbr.rel (%p157) target = $region28
      $region27: #{tpu_custom_call.1} parent=5 // pred_region
        %s161 = ssub.s32 %s13, 1
        %s162 = sand.u32 %s40, 1
        %s163 = scalar_lea.sflag [#allocation4], %s162
        %s164 = sand.u32 %s40, 1
        %s165 = smul.addr %s164, 16
        %s166 = scalar_lea.vmem [#allocation3], %s165
        // Predicated region
        $region29: #{tpu_custom_call.1} parent=27 // pred_check
          %p167 = pneg %p53
        $region30: #{tpu_custom_call.1} parent=27 // pred_check_branch
          %169 = sbr.rel (%p167) target = $region32
        $region31: #{tpu_custom_call.1} parent=27 // pred_region
          %171 = dma.done %s163, 256
        $region32: #{tpu_custom_call.1} parent=27 // pred_fallthru
          _
        // Predicated region
        $region33: #{tpu_custom_call.1} parent=27 // pred_check
          %p172 = pneg %p79
        $region34: #{tpu_custom_call.1} parent=27 // pred_check_branch
          %174 = sbr.rel (%p172) target = $region36
        $region35: #{tpu_custom_call.1} parent=27 // pred_region
          %176 = dma.done [#allocation7], 32
        $region36: #{tpu_custom_call.1} parent=27 // pred_fallthru
          _
        %s177 = sand.u32 %s40, 1
        %s178 = scalar_lea.sflag [#allocation4], %s177
        %s179 = sand.u32 %s40, 1
        %s180 = smul.addr %s179, 16
        %s181 = scalar_lea.vmem [#allocation3], %s180
        %p182 = pneg %p53
        %p183 = pneg %p50
        %p184 = pneg %p79
        %p185 = pneg %p76
        %p186 = pneg %p100
        %p187 = pneg %p97
        %s188 = smul.u32 2, %s22
        %s189 = smul.u32 2, %s22
        %p190 = scmp.eq.s32.totalorder %s22, 0
        %p191 = scmp.eq.s32.totalorder %s23, 0
        %p192 = pnand %p190, %p191
        %p193 = pneg %p192
        // Predicated region
        $region37: #{tpu_custom_call.1} parent=27 // pred_check
          _
        $region38: #{tpu_custom_call.1} parent=27 // pred_check_branch
          %195 = sbr.rel (%p192) target = $region40
        $region39: #{tpu_custom_call.1} parent=27 // pred_region
          %196 = vst [vmem:[#allocation2] sm:$0xff] 0.0
        $region40: #{tpu_custom_call.1} parent=27 // pred_fallthru
          _
        %v197 = vlaneseq
        %v198 = vand.u32 %v197, 127
        %v199 = vadd.s32 %v198, 128
        %s200 = smul.u32 %s22, 256
        %v201 = vstv %s200
        %v202 = vadd.s32 %v201, %v198
        %v203 = vadd.s32 %v201, %v199
        %vm204 = vcmp.lt.s32.totalorder %v202, 256
        %vm205 = vcmp.lt.s32.totalorder %v203, 256
        %v206 = vld [vmem:[%s166] sm:$0xff]
        %v207 = vld [vmem:[%s166 + $0x8] sm:$0xff]
        %v208 = vsel %vm204, 1, 0
        %v209 = vsel %vm205, 1, 0
        %vm210 = vcmp.eq.s32.totalorder %v208, 1
        %vm211 = vcmp.eq.s32.totalorder %v209, 1
        %v212 = vsel %vm210, %v206, 0.0
        %v213 = vsel %vm211, %v207, 0.0
        %v214 = vld [vmem:[#allocation6] sm:$0x3]
        %v215 = vunpack.c.l.bf16 %v214
        %v217 = vperm.slane %v215, 0
        %v218 = vperm.slane %v215, 2
        %v221 = vsel %vm204, %v217, 0.0
        %v222 = vsel %vm205, %v218, 0.0
        %v223 = vrot.slane %v212, 4
        %v224 = vmax.f32 %v212, %v223
        %v225 = vrot.slane %v224, 2
        %v226 = vmax.f32 %v224, %v225
        %v227 = vrot.slane %v226, 1
        %v228 = vmax.f32 %v226, %v227
        %v229 = vrot.slane %v213, 4
        %v230 = vmax.f32 %v213, %v229
        %v231 = vrot.slane %v230, 2
        %v232 = vmax.f32 %v230, %v231
        %v233 = vrot.slane %v232, 1
        %v234 = vmax.f32 %v232, %v233
        %v235 = vsub.f32 %v212, %v228
        %v236 = vsub.f32 %v213, %v234
        %v237 = vmul.f32 %v235, 1.442695
        %v238 = vpow.pop %v237
        %v239 = vmul.f32 %v236, 1.442695
        %v240 = vpow.pop %v239
        %v241 = vrot.slane %v238, 4
        %v242 = vadd.f32 %v238, %v241
        %v243 = vrot.slane %v242, 2
        %v244 = vadd.f32 %v242, %v243
        %v245 = vrot.slane %v244, 1
        %v246 = vadd.f32 %v244, %v245
        %v247 = vrot.slane %v240, 4
        %v248 = vadd.f32 %v240, %v247
        %v249 = vrot.slane %v248, 2
        %v250 = vadd.f32 %v248, %v249
        %v251 = vrot.slane %v250, 1
        %v252 = vadd.f32 %v250, %v251
        %v253 = vrcp.pop %v246
        %v254 = vrcp.pop %v252
        %v255 = vmul.f32 %v221, %v253
        %v256 = vmul.f32 %v222, %v254
        %v257 = vperm.slane %v255, 0
        %v258 = vperm.slane %v256, 0
        %v259 = vmul.f32 %v238, %v257
        %v260 = vmul.f32 %v240, %v258
        %v261 = vlaneseq
        %v262 = vshrl.u32 %v261, 7
        %vm263 = vcmp.eq.f32.partialorder %v212, %v228
        %vm264 = vcmp.eq.f32.partialorder %v213, %v234
        %v265 = vsel %vm263, %v262, 8
        %v266 = vsel %vm264, %v262, 8
        %v267 = vrot.slane %v265, 4
        %vm268 = vcmp.lt.s32.totalorder %v265, %v267
        %v269 = vsel %vm268, %v265, %v267
        %v270 = vrot.slane %v269, 2
        %vm271 = vcmp.lt.s32.totalorder %v269, %v270
        %v272 = vsel %vm271, %v269, %v270
        %v273 = vrot.slane %v272, 1
        %vm274 = vcmp.lt.s32.totalorder %v272, %v273
        %v275 = vsel %vm274, %v272, %v273
        %v276 = vrot.slane %v266, 4
        %vm277 = vcmp.lt.s32.totalorder %v266, %v276
        %v278 = vsel %vm277, %v266, %v276
        %v279 = vrot.slane %v278, 2
        %vm280 = vcmp.lt.s32.totalorder %v278, %v279
        %v281 = vsel %vm280, %v278, %v279
        %v282 = vrot.slane %v281, 1
        %vm283 = vcmp.lt.s32.totalorder %v281, %v282
        %v284 = vsel %vm283, %v281, %v282
        %vm285 = vcmp.eq.s32.totalorder %v262, %v275
        %vm286 = vcmp.eq.s32.totalorder %v262, %v284
        %v287 = vperm.slane %v221, 0
        %v288 = vperm.slane %v222, 0
        %v289 = vsel %vm285, %v287, 0.0
        %v290 = vsel %vm286, %v288, 0.0
        %v291 = vadd.f32 %v289, 0.0
        %v292 = vadd.f32 %v290, 0.0
        %v293 = vsel %vm285, -inf, %v212
        %v294 = vsel %vm286, -inf, %v213
        %v295 = vrot.slane %v293, 4
        %v296 = vmax.f32 %v293, %v295
        %v297 = vrot.slane %v296, 2
        %v298 = vmax.f32 %v296, %v297
        %v299 = vrot.slane %v298, 1
        %v300 = vmax.f32 %v298, %v299
        %v301 = vrot.slane %v294, 4
        %v302 = vmax.f32 %v294, %v301
        %v303 = vrot.slane %v302, 2
        %v304 = vmax.f32 %v302, %v303
        %v305 = vrot.slane %v304, 1
        %v306 = vmax.f32 %v304, %v305
        %vm307 = vcmp.eq.f32.partialorder %v293, %v300
        %vm308 = vcmp.eq.f32.partialorder %v294, %v306
        %v309 = vsel %vm307, %v262, 8
        %v310 = vsel %vm308, %v262, 8
        %v311 = vrot.slane %v309, 4
        %vm312 = vcmp.lt.s32.totalorder %v309, %v311
        %v313 = vsel %vm312, %v309, %v311
        %v314 = vrot.slane %v313, 2
        %vm315 = vcmp.lt.s32.totalorder %v313, %v314
        %v316 = vsel %vm315, %v313, %v314
        %v317 = vrot.slane %v316, 1
        %vm318 = vcmp.lt.s32.totalorder %v316, %v317
        %v319 = vsel %vm318, %v316, %v317
        %v320 = vrot.slane %v310, 4
        %vm321 = vcmp.lt.s32.totalorder %v310, %v320
        %v322 = vsel %vm321, %v310, %v320
        %v323 = vrot.slane %v322, 2
        %vm324 = vcmp.lt.s32.totalorder %v322, %v323
        %v325 = vsel %vm324, %v322, %v323
        %v326 = vrot.slane %v325, 1
        %vm327 = vcmp.lt.s32.totalorder %v325, %v326
        %v328 = vsel %vm327, %v325, %v326
        %vm329 = vcmp.eq.s32.totalorder %v262, %v319
        %vm330 = vcmp.eq.s32.totalorder %v262, %v328
        %v331 = vsel %vm329, %v287, 0.0
        %v332 = vsel %vm330, %v288, 0.0
        %v333 = vadd.f32 %v291, %v331
        %v334 = vadd.f32 %v292, %v332
        %v335 = vadd.f32 %v259, %v260
        %336 = vadd.xlane.f32.xlu0 %v335
        %v337 = vpop.xlane.xlu0 %336
        %v338 = vadd.f32 %v333, %v334
        %339 = vadd.xlane.f32.xlu0 %v338
        %v340 = vpop.xlane.xlu0 %339
        %vm341 = vcmask 1040384
        %v342 = vsel %vm341, %v221, 0.0
        %v343 = vsel %vm341, %v222, 0.0
        %v344 = vadd.f32 %v342, %v343
        %345 = vadd.xlane.f32.xlu0 %v344
        %v346 = vpop.xlane.xlu0 %345
        %v347 = vld [vmem:[#allocation2] sm:$0xff]
        %vm348 = vcmp.eq.s32.totalorder %v198, 0
        %v349 = vsel %vm348, %v337, 0.0
        %vm350 = vcmp.eq.s32.totalorder %v198, 1
        %v351 = vsel %vm350, %v340, 0.0
        %v352 = vadd.f32 %v349, %v351
        %vm353 = vcmp.eq.s32.totalorder %v198, 2
        %v354 = vperm.slane %v346, 0
        %v355 = vsel %vm353, %v354, 0.0
        %v356 = vadd.f32 %v352, %v355
        %v357 = vadd.f32 %v347, %v356
        %358 = vst [vmem:[#allocation2] sm:$0xff] %v357
        %p359 = scmp.eq.s32.totalorder %s23, 1
        %p360 = pnand %p190, %p359
        %p361 = pneg %p360
        // Predicated region
        $region41: #{tpu_custom_call.1} parent=27 // pred_check
          _
        $region42: #{tpu_custom_call.1} parent=27 // pred_check_branch
          %363 = sbr.rel (%p360) target = $region44
        $region43: #{tpu_custom_call.1} parent=27 // pred_region
          %v364 = vld [vmem:[#allocation2] sm:$0xff]
          %365 = vst [vmem:[#allocation8] sm:$0xff] %v364
        $region44: #{tpu_custom_call.1} parent=27 // pred_fallthru
          _
        // Predicated region
        $region45: #{tpu_custom_call.1} parent=27 // pred_check
          %p366 = pneg %p97
        $region46: #{tpu_custom_call.1} parent=27 // pred_check_branch
          %368 = sbr.rel (%p366) target = $region48
        $region47: #{tpu_custom_call.1} parent=27 // pred_region
          %370 = vsyncadd [#allocation5], 0
          %s372 = sshll.u32 [#allocation8], 4
          %s373 = int_to_ptr.vmem [resolvable:$true] %s372
          %s374 = sshll.u32 %s2, 4
          %s375 = int_to_ptr.hbm [resolvable:$true] %s374
          %377 = dma.vmem_to_hbm [thread:$0]  %s373, 128, %s375, [#allocation5]
        $region48: #{tpu_custom_call.1} parent=27 // pred_fallthru
          _
        // Predicated region
        $region49: #{tpu_custom_call.1} parent=27 // pred_check
          %p378 = pneg %p97
        $region50: #{tpu_custom_call.1} parent=27 // pred_check_branch
          %380 = sbr.rel (%p378) target = $region52
        $region51: #{tpu_custom_call.1} parent=27 // pred_region
          %382 = dma.done [#allocation5], 128
        $region52: #{tpu_custom_call.1} parent=27 // pred_fallthru
          _
      $region28: #{tpu_custom_call.1} parent=5 // pred_fallthru
        _
      %p383 = scmp.le.s32.totalorder 2, %s13
      // Predicated region
      $region53: #{tpu_custom_call.1} parent=5 // pred_check
        %p384 = pneg %p383
      $region54: #{tpu_custom_call.1} parent=5 // pred_check_branch
        %386 = sbr.rel (%p384) target = $region56
      $region55: #{tpu_custom_call.1} parent=5 // pred_region
        %s387 = ssub.s32 %s13, 2
      $region56: #{tpu_custom_call.1} parent=5 // pred_fallthru
        _
    $region6: #{tpu_custom_call.1} parent=1 // loop_footer
      %s17 = sadd.s32 1, %s13
    $region7: #{tpu_custom_call.1} parent=1 // loop_footer_branch
      %12 = sbr.rel target = $region3
    $region8: #{tpu_custom_call.1} parent=1 // loop_exit
      _
    %388 = vsyncpa [#allocation4], 1
    %s389 = scalar_lea.sflag [#allocation4], 1
    %390 = vsyncpa %s389, 1
    %391 = vsyncpa [#allocation7], 1
    %392 = vsyncpa [#allocation5], 1
    %s393 = scalar_lea.sflag [#allocation5], 1
    %394 = vsyncpa %s393, 1

</llo_original>
